<compile_context>
chip_gen: v6e
topology: v6e:2x2x1
jax: 0.10.0
libtpu: 0.0.40
codegen_flags: <defaults>
</compile_context>

<pallas_src>
import jax
import jax.numpy as jnp
from jax.experimental import pallas as pl
from jax.experimental.pallas import tpu as pltpu


def _round_up(x, m):
    return ((x + m - 1) // m) * m


def _siamese_kernel(x1_ref, x2_ref, wa_ref, wb_ref, bc_ref, wot_ref, bo_ref,
                    out_ref):
    # (TILE_B, D) input tiles (possibly bf16); weights are VMEM-resident.
    x1 = x1_ref[...]
    x2 = x2_ref[...]

    # combination function: 'concat' == [|x1 - x2|, x1 * x2]
    h_sub = jnp.abs(x1 - x2)            # (TILE_B, D)
    h_ang = x1 * x2                     # (TILE_B, D)

    # concat(h_sub, h_ang) @ W_comb + b_comb  ==  h_sub @ W_a + h_ang @ W_b + b
    hidden = (
        jnp.dot(h_sub, wa_ref[...], preferred_element_type=jnp.float32)
        + jnp.dot(h_ang, wb_ref[...], preferred_element_type=jnp.float32)
        + bc_ref[...]                   # (1, H) broadcast over the batch tile
    )

    # dropout p=0.0 -> identity; batch_norm=False -> skipped
    hidden = jax.nn.sigmoid(hidden)     # (TILE_B, H) f32

    # Output layer (H -> 1): N=1 MXU matmul replaced by VPU mul + lane reduce.
    logits = jnp.sum(hidden * wot_ref[...], axis=-1, keepdims=True)
    logits = logits + bo_ref[0, 0]      # scalar bias from SMEM
    out_ref[...] = logits.astype(out_ref.dtype)


def siamese_regressor_forward(x1, x2, params, *, tile_b=1024, use_bf16=True):
    """params: dict with w_comb (2D, H), b_comb (H,), w_out (H, 1), b_out (1,)."""
    B, D = x1.shape
    H = params["b_comb"].shape[0]

    in_dtype = jnp.bfloat16 if use_bf16 else jnp.float32
    itemsize = 2 if use_bf16 else 4

    # Split the concat-weight so the kernel avoids materializing the concat.
    w_comb = params["w_comb"]                          # (2D, H)
    wa = w_comb[:D, :].astype(in_dtype)                # applied to |x1 - x2|
    wb = w_comb[D:, :].astype(in_dtype)                # applied to x1 * x2
    bc = params["b_comb"].reshape(1, H).astype(jnp.float32)
    wo_t = params["w_out"].reshape(1, H).astype(jnp.float32)   # transposed
    bo = params["b_out"].reshape(1, 1).astype(jnp.float32)

    # Batch tiling: tile must be a multiple of 8 sublanes; pad B up to a
    # multiple of the tile (padded rows produce finite junk, sliced off below).
    tile_b = max(8, _round_up(min(tile_b, _round_up(B, 8)), 8))
    padded_b = _round_up(B, tile_b)
    num_tiles = padded_b // tile_b

    x1p = x1.astype(in_dtype)
    x2p = x2.astype(in_dtype)
    if padded_b != B:
        pad = ((0, padded_b - B), (0, 0))
        x1p = jnp.pad(x1p, pad)
        x2p = jnp.pad(x2p, pad)

    # Advisory cost estimate for XLA scheduling around the custom call.
    weight_bytes = 2 * D * H * itemsize + 2 * H * 4 + 4
    cost = pl.CostEstimate(
        flops=int(padded_b * (4 * D * H + 2 * H + 3 * D)),
        transcendentals=int(padded_b * H),
        bytes_accessed=int(2 * padded_b * D * itemsize + padded_b * 4
                           + weight_bytes),
    )

    # VMEM budget: 2x double-buffered input tiles + output tile + resident
    # weights + headroom; clamp to stay within v7x's 64 MiB physical VMEM.
    vmem_est = (2 * (2 * tile_b * D * itemsize + tile_b * 4)
                + weight_bytes + (2 << 20))
    vmem_limit = int(min(max(vmem_est, 16 << 20), 48 << 20))

    out = pl.pallas_call(
        _siamese_kernel,
        out_shape=jax.ShapeDtypeStruct((padded_b, 1), jnp.float32),
        grid=(num_tiles,),
        in_specs=[
            pl.BlockSpec((tile_b, D), lambda i: (i, 0)),        # x1 tile
            pl.BlockSpec((tile_b, D), lambda i: (i, 0)),        # x2 tile
            pl.BlockSpec((D, H), lambda i: (0, 0)),             # W_a (resident)
            pl.BlockSpec((D, H), lambda i: (0, 0)),             # W_b (resident)
            pl.BlockSpec((1, H), lambda i: (0, 0)),             # b_comb
            pl.BlockSpec((1, H), lambda i: (0, 0)),             # w_out^T
            pl.BlockSpec((1, 1), lambda i: (0, 0),
                         memory_space=pltpu.MemorySpace.SMEM),  # b_out scalar
        ],
        out_specs=pl.BlockSpec((tile_b, 1), lambda i: (i, 0)),
        compiler_params=pltpu.CompilerParams(
            dimension_semantics=("parallel",),
            vmem_limit_bytes=vmem_limit,
        ),
        cost_estimate=cost,
    )(x1p, x2p, wa, wb, bc, wo_t, bo)

    return out[:B]


def init_params(key, input_dim, hidden_dim):
    """Deterministic init matching nn.Linear shapes (weights stored transposed:
    (in, out) so the kernel does x @ W)."""
    k1, k2, k3, k4 = jax.random.split(key, 4)
    lim1 = 1.0 / jnp.sqrt(2.0 * input_dim)
    lim2 = 1.0 / jnp.sqrt(float(hidden_dim))
    return {
        "w_comb": jax.random.uniform(k1, (2 * input_dim, hidden_dim),
                                     jnp.float32, -lim1, lim1),
        "b_comb": jax.random.uniform(k2, (hidden_dim,), jnp.float32, -lim1, lim1),
        "w_out": jax.random.uniform(k3, (hidden_dim, 1), jnp.float32, -lim2, lim2),
        "b_out": jax.random.uniform(k4, (1,), jnp.float32, -lim2, lim2),
    }


def _reference_forward(x1, x2, params):
    """Plain-JAX reference mirroring the PyTorch forward (concat path)."""
    inp = jnp.concatenate([jnp.abs(x1 - x2), x1 * x2], axis=1)
    h = inp @ params["w_comb"] + params["b_comb"]
    h = jax.nn.sigmoid(h)
    logits = h @ params["w_out"] + params["b_out"]
    return logits.reshape(-1, 1)


if __name__ == "__main__":
    key = jax.random.PRNGKey(0)
    k_x1, k_x2, k_p, k_x3, k_x4 = jax.random.split(key, 5)

    B, INPUT_DIM, HIDDEN_DIM = 8, 32, 32
    x1 = jax.random.normal(k_x1, (B, INPUT_DIM), jnp.float32)
    x2 = jax.random.normal(k_x2, (B, INPUT_DIM), jnp.float32)
    params = init_params(k_p, INPUT_DIM, HIDDEN_DIM)

    ref = _reference_forward(x1, x2, params)

    # f32 streaming path: must match the reference tightly.
    out_f32 = jax.block_until_ready(
        siamese_regressor_forward(x1, x2, params, tile_b=8, use_bf16=False))
    assert out_f32.shape == (B, 1)
    assert jnp.allclose(out_f32, ref, atol=1e-5, rtol=1e-5)

    # bf16 streaming path (default, halves HBM bytes): loose tolerance vs f32.
    out_bf16 = jax.block_until_ready(siamese_regressor_forward(x1, x2, params))
    assert out_bf16.shape == (B, 1)
    assert jnp.allclose(out_bf16, ref, atol=3e-2, rtol=3e-2)

    # Ragged batch (B not a multiple of the tile): exercises padding + grid > 1.
    B2 = 50
    x3 = jax.random.normal(k_x3, (B2, INPUT_DIM), jnp.float32)
    x4 = jax.random.normal(k_x4, (B2, INPUT_DIM), jnp.float32)
    ref2 = _reference_forward(x3, x4, params)
    out2 = jax.block_until_ready(
        siamese_regressor_forward(x3, x4, params, tile_b=16, use_bf16=False))
    assert out2.shape == (B2, 1)
    assert jnp.allclose(out2, ref2, atol=1e-5, rtol=1e-5)

    print("KERNEL_OK")
</pallas_src>

<mosaic_0001>
module attributes {stable_mosaic.version = 11 : i64} {
  func.func @_siamese_kernel(%arg0: i32, %arg1: memref<8x32xf32, #tpu.memory_space<vmem>>, %arg2: memref<8x32xf32, #tpu.memory_space<vmem>>, %arg3: memref<32x32xf32, #tpu.memory_space<vmem>>, %arg4: memref<32x32xf32, #tpu.memory_space<vmem>>, %arg5: memref<1x32xf32, #tpu.memory_space<vmem>>, %arg6: memref<1x32xf32, #tpu.memory_space<vmem>>, %arg7: memref<1x1xf32, #tpu.memory_space<smem>>, %arg8: memref<8x1xf32, #tpu.memory_space<vmem>>) attributes {dimension_semantics = [#tpu.dimension_semantics<parallel>], iteration_bounds = array<i64: 1>, scalar_prefetch = 0 : i64, scratch_operands = 0 : i64, tpu.core_type = #tpu.core_type<tc>, window_params = [{transform_indices = @transform_0, window_bounds = array<i64: 8, 32>}, {transform_indices = @transform_1, window_bounds = array<i64: 8, 32>}, {pipeline_mode = #tpu.pipeline_mode<synchronous>, transform_indices = @transform_2, window_bounds = array<i64: 32, 32>}, {pipeline_mode = #tpu.pipeline_mode<synchronous>, transform_indices = @transform_3, window_bounds = array<i64: 32, 32>}, {pipeline_mode = #tpu.pipeline_mode<synchronous>, transform_indices = @transform_4, window_bounds = array<i64: 1, 32>}, {pipeline_mode = #tpu.pipeline_mode<synchronous>, transform_indices = @transform_5, window_bounds = array<i64: 1, 32>}, {transform_indices = @transform_6, window_bounds = array<i64: 1, 1>}, {transform_indices = @transform_7, window_bounds = array<i64: 8, 1>}]} {
    %c0 = arith.constant 0 : index
    %c0_0 = arith.constant 0 : index
    %0 = vector.load %arg1[%c0, %c0_0] : memref<8x32xf32, #tpu.memory_space<vmem>>, vector<8x32xf32>
    %c0_1 = arith.constant 0 : index
    %c0_2 = arith.constant 0 : index
    %1 = vector.load %arg2[%c0_1, %c0_2] : memref<8x32xf32, #tpu.memory_space<vmem>>, vector<8x32xf32>
    %2 = arith.subf %0, %1 : vector<8x32xf32>
    %3 = math.absf %2 : vector<8x32xf32>
    %4 = arith.mulf %0, %1 : vector<8x32xf32>
    %c0_3 = arith.constant 0 : index
    %c0_4 = arith.constant 0 : index
    %5 = vector.load %arg3[%c0_3, %c0_4] : memref<32x32xf32, #tpu.memory_space<vmem>>, vector<32x32xf32>
    %cst = arith.constant dense<0.000000e+00> : vector<8x32xf32>
    %6 = tpu.matmul %3, %5, %cst {dimension_numbers = #tpu.dot_dimension_numbers<[1], [0], [0], [1], [0, 0, 1, 1], [], []>} : vector<8x32xf32>, vector<32x32xf32>, vector<8x32xf32> -> vector<8x32xf32>
    %c0_5 = arith.constant 0 : index
    %c0_6 = arith.constant 0 : index
    %7 = vector.load %arg4[%c0_5, %c0_6] : memref<32x32xf32, #tpu.memory_space<vmem>>, vector<32x32xf32>
    %cst_7 = arith.constant dense<0.000000e+00> : vector<8x32xf32>
    %8 = tpu.matmul %4, %7, %cst_7 {dimension_numbers = #tpu.dot_dimension_numbers<[1], [0], [0], [1], [0, 0, 1, 1], [], []>} : vector<8x32xf32>, vector<32x32xf32>, vector<8x32xf32> -> vector<8x32xf32>
    %9 = arith.addf %6, %8 : vector<8x32xf32>
    %c0_8 = arith.constant 0 : index
    %c0_9 = arith.constant 0 : index
    %10 = vector.load %arg5[%c0_8, %c0_9] : memref<1x32xf32, #tpu.memory_space<vmem>>, vector<1x32xf32>
    %11 = vector.broadcast %10 : vector<1x32xf32> to vector<8x32xf32>
    %12 = arith.addf %9, %11 : vector<8x32xf32>
    %13 = arith.negf %12 : vector<8x32xf32>
    %14 = math.exp %13 : vector<8x32xf32>
    %cst_10 = arith.constant 1.000000e+00 : f32
    %15 = vector.broadcast %cst_10 : f32 to vector<8x32xf32>
    %16 = arith.addf %15, %14 : vector<8x32xf32>
    %17 = arith.divf %15, %16 : vector<8x32xf32>
    %c0_11 = arith.constant 0 : index
    %c0_12 = arith.constant 0 : index
    %18 = vector.load %arg6[%c0_11, %c0_12] : memref<1x32xf32, #tpu.memory_space<vmem>>, vector<1x32xf32>
    %19 = vector.broadcast %18 : vector<1x32xf32> to vector<8x32xf32>
    %20 = arith.mulf %17, %19 : vector<8x32xf32>
    %cst_13 = arith.constant dense<0.000000e+00> : vector<8xf32>
    %21 = vector.multi_reduction <add>, %20, %cst_13 [1] : vector<8x32xf32> to vector<8xf32>
    %22 = vector.shape_cast %21 : vector<8xf32> to vector<8x1xf32>
    %c0_14 = arith.constant 0 : index
    %c0_15 = arith.constant 0 : index
    %23 = memref.load %arg7[%c0_14, %c0_15] : memref<1x1xf32, #tpu.memory_space<smem>>
    %24 = vector.broadcast %23 : f32 to vector<8x1xf32>
    %25 = arith.addf %22, %24 : vector<8x1xf32>
    %c0_16 = arith.constant 0 : index
    %c0_17 = arith.constant 0 : index
    %26 = vector.load %arg8[%c0_16, %c0_17] : memref<8x1xf32, #tpu.memory_space<vmem>>, vector<8x1xf32>
    tpu.vector_store %arg8[%c0_16, %c0_17], %25 {strides = array<i32>} : memref<8x1xf32, #tpu.memory_space<vmem>>, vector<8x1xf32>,
    return
  }
  func.func @transform_0(%arg0: i32) -> (i32, i32) {
    %c0_i32 = arith.constant 0 : i32
    %c0_i32_0 = arith.constant 0 : i32
    return %arg0, %c0_i32 : i32, i32
  }
  func.func @transform_1(%arg0: i32) -> (i32, i32) {
    %c0_i32 = arith.constant 0 : i32
    %c0_i32_0 = arith.constant 0 : i32
    return %arg0, %c0_i32 : i32, i32
  }
  func.func @transform_2(%arg0: i32) -> (i32, i32) {
    %c0_i32 = arith.constant 0 : i32
    %c0_i32_0 = arith.constant 0 : i32
    %c0_i32_1 = arith.constant 0 : i32
    return %c0_i32, %c0_i32_0 : i32, i32
  }
  func.func @transform_3(%arg0: i32) -> (i32, i32) {
    %c0_i32 = arith.constant 0 : i32
    %c0_i32_0 = arith.constant 0 : i32
    %c0_i32_1 = arith.constant 0 : i32
    return %c0_i32, %c0_i32_0 : i32, i32
  }
  func.func @transform_4(%arg0: i32) -> (i32, i32) {
    %c0_i32 = arith.constant 0 : i32
    %c0_i32_0 = arith.constant 0 : i32
    %c0_i32_1 = arith.constant 0 : i32
    return %c0_i32, %c0_i32_0 : i32, i32
  }
  func.func @transform_5(%arg0: i32) -> (i32, i32) {
    %c0_i32 = arith.constant 0 : i32
    %c0_i32_0 = arith.constant 0 : i32
    %c0_i32_1 = arith.constant 0 : i32
    return %c0_i32, %c0_i32_0 : i32, i32
  }
  func.func @transform_6(%arg0: i32) -> (i32, i32) {
    %c0_i32 = arith.constant 0 : i32
    %c0_i32_0 = arith.constant 0 : i32
    %c0_i32_1 = arith.constant 0 : i32
    return %c0_i32, %c0_i32_0 : i32, i32
  }
  func.func @transform_7(%arg0: i32) -> (i32, i32) {
    %c0_i32 = arith.constant 0 : i32
    %c0_i32_0 = arith.constant 0 : i32
    return %arg0, %c0_i32 : i32, i32
  }
}

</mosaic_0001>

<llo_original>
// kernel: tpu_custom_call.1
$region0: #{tpu_custom_call.1}
  #allocation0 [shape = 'u32[]', space=smem, size = 0x4, offset = 0x4, fixed_abs, tag = 'smem constant byte address 0x4 - core index']
  #allocation1 [shape = 'u32[144,128]{1,0:T(1,128)}', space=vmem, size = 0x12000, scoped, tag = 'internal scratch']
  #allocation2 [shape = 'f32[1,1]{1,0:T(1,128)S(6)}', space=smem, size = 0x200, scoped, tag = 'scoped memory for tpu_custom_call.1']
  %s0 = inlined_call_operand.hbm [shape: f32[8,32], index: 0, kind: input, shape index: {}]
  %s1 = inlined_call_operand.hbm [shape: f32[8,32], index: 1, kind: input, shape index: {}]
  %s2 = inlined_call_operand.hbm [shape: f32[32,32], index: 2, kind: input, shape index: {}]
  %s3 = inlined_call_operand.hbm [shape: f32[32,32], index: 3, kind: input, shape index: {}]
  %s4 = inlined_call_operand.vmem [shape: f32[1,32], index: 4, kind: input, shape index: {}]
  %s5 = inlined_call_operand.vmem [shape: f32[1,32], index: 5, kind: input, shape index: {}]
  %s6 = inlined_call_operand.<no memory space> [shape: f32[1,1], index: 6, kind: input, shape index: {}]
  %s7 = inlined_call_operand.vmem [shape: f32[8,1], index: 7, kind: output, shape index: {}]
  %s8 = sld [smem:[#allocation0]]
  $region54: #{tpu_custom_call.1} parent=0
    _
  %s10 = ssub.s32 1, %s8
  %s11 = scalar_select 0, %s10, %s8
  %12 = sst [smem:[#allocation2]] %s6
  $region1: #{tpu_custom_call.1} parent=0
    #allocation3 [shape = 'u8[4096]{0}', space=vmem, size = 0x1000, scoped, tag = 'input window, operand 0, single buffered']
    #allocation4 [shape = 's32[1]{0}', space=sflag, size = 0x4, scoped, tag = 'scoped memory for tpu_custom_call.1']
    #allocation5 [shape = 'u8[4096]{0}', space=vmem, size = 0x1000, scoped, tag = 'input window, operand 1, single buffered']
    #allocation6 [shape = 's32[1]{0}', space=sflag, size = 0x4, scoped, tag = 'scoped memory for tpu_custom_call.1']
    #allocation7 [shape = 'u8[16384]{0}', space=vmem, size = 0x4000, scoped, tag = 'input window, operand 2, single buffered']
    #allocation8 [shape = 'u8[16384]{0}', space=vmem, size = 0x4000, scoped, tag = 'input window, operand 3, single buffered']
    #allocation9 [shape = 's32[1]{0}', space=sflag, size = 0x4, scoped, tag = 'scoped memory for tpu_custom_call.1']
    %13 = vsyncpa [#allocation4], 0
    %14 = vsyncpa [#allocation6], 0
    %15 = vsyncpa [#allocation9], 0
    // Predicated region
    $region2: #{tpu_custom_call.1} parent=1 // pred_check
      _
    $region3: #{tpu_custom_call.1} parent=1 // pred_check_branch
      %17 = sbr.rel (0) target = $region5
    $region4: #{tpu_custom_call.1} parent=1 // pred_region
      %s19 = ssub.s32 128, 128
      %20 = vsyncadd [#allocation4], %s19
      %s22 = sshll.u32 [#allocation3], 4
      %s23 = int_to_ptr.vmem [resolvable:$true] %s22
      %25 = dma.hbm_to_vmem [thread:$0]  %s0, 128, %s23, [#allocation4]
    $region5: #{tpu_custom_call.1} parent=1 // pred_fallthru
      _
    // Predicated region
    $region6: #{tpu_custom_call.1} parent=1 // pred_check
      _
    $region7: #{tpu_custom_call.1} parent=1 // pred_check_branch
      %27 = sbr.rel (0) target = $region9
    $region8: #{tpu_custom_call.1} parent=1 // pred_region
      %s29 = ssub.s32 128, 128
      %30 = vsyncadd [#allocation6], %s29
      %s32 = sshll.u32 [#allocation5], 4
      %s33 = int_to_ptr.vmem [resolvable:$true] %s32
      %35 = dma.hbm_to_vmem [thread:$0]  %s1, 128, %s33, [#allocation6]
    $region9: #{tpu_custom_call.1} parent=1 // pred_fallthru
      _
    // Predicated region
    $region10: #{tpu_custom_call.1} parent=1 // pred_check
      _
    $region11: #{tpu_custom_call.1} parent=1 // pred_check_branch
      %37 = sbr.rel (0) target = $region13
    $region12: #{tpu_custom_call.1} parent=1 // pred_region
      %s39 = ssub.s32 512, 512
      %40 = vsyncadd [#allocation6], %s39
      %s41 = sshll.u32 [#allocation7], 4
      %s42 = int_to_ptr.vmem [resolvable:$true] %s41
      %47 = dma.hbm_to_vmem [thread:$0]  %s2, 512, %s42, [#allocation6], 128, 128, 8
    $region13: #{tpu_custom_call.1} parent=1 // pred_fallthru
      _
    // Predicated region
    $region14: #{tpu_custom_call.1} parent=1 // pred_check
      _
    $region15: #{tpu_custom_call.1} parent=1 // pred_check_branch
      %49 = sbr.rel (0) target = $region17
    $region16: #{tpu_custom_call.1} parent=1 // pred_region
      %s51 = ssub.s32 512, 512
      %52 = vsyncadd [#allocation9], %s51
      %s53 = sshll.u32 [#allocation8], 4
      %s54 = int_to_ptr.vmem [resolvable:$true] %s53
      %59 = dma.hbm_to_vmem [thread:$0]  %s3, 512, %s54, [#allocation9], 128, 128, 8
    $region17: #{tpu_custom_call.1} parent=1 // pred_fallthru
      _
    // Predicated region
    $region18: #{tpu_custom_call.1} parent=1 // pred_check
      _
    $region19: #{tpu_custom_call.1} parent=1 // pred_check_branch
      %61 = sbr.rel (0) target = $region21
    $region20: #{tpu_custom_call.1} parent=1 // pred_region
      _
    $region21: #{tpu_custom_call.1} parent=1 // pred_fallthru
      _
    // Predicated region
    $region22: #{tpu_custom_call.1} parent=1 // pred_check
      _
    $region23: #{tpu_custom_call.1} parent=1 // pred_check_branch
      %63 = sbr.rel (0) target = $region25
    $region24: #{tpu_custom_call.1} parent=1 // pred_region
      _
    $region25: #{tpu_custom_call.1} parent=1 // pred_fallthru
      _
    // Predicated region
    $region26: #{tpu_custom_call.1} parent=1 // pred_check
      _
    $region27: #{tpu_custom_call.1} parent=1 // pred_check_branch
      %65 = sbr.rel (0) target = $region29
    $region28: #{tpu_custom_call.1} parent=1 // pred_region
      _
    $region29: #{tpu_custom_call.1} parent=1 // pred_fallthru
      _
    // Predicated region
    $region30: #{tpu_custom_call.1} parent=1 // pred_check
      _
    $region31: #{tpu_custom_call.1} parent=1 // pred_check_branch
      %67 = sbr.rel (0) target = $region33
    $region32: #{tpu_custom_call.1} parent=1 // pred_region
      %68 = dma.done [#allocation4], 128
    $region33: #{tpu_custom_call.1} parent=1 // pred_fallthru
      _
    // Predicated region
    $region34: #{tpu_custom_call.1} parent=1 // pred_check
      _
    $region35: #{tpu_custom_call.1} parent=1 // pred_check_branch
      %70 = sbr.rel (0) target = $region37
    $region36: #{tpu_custom_call.1} parent=1 // pred_region
      %71 = dma.done [#allocation6], 128
    $region37: #{tpu_custom_call.1} parent=1 // pred_fallthru
      _
    // Predicated region
    $region38: #{tpu_custom_call.1} parent=1 // pred_check
      _
    $region39: #{tpu_custom_call.1} parent=1 // pred_check_branch
      %73 = sbr.rel (0) target = $region41
    $region40: #{tpu_custom_call.1} parent=1 // pred_region
      %74 = dma.done [#allocation6], 512
    $region41: #{tpu_custom_call.1} parent=1 // pred_fallthru
      _
    // Predicated region
    $region42: #{tpu_custom_call.1} parent=1 // pred_check
      _
    $region43: #{tpu_custom_call.1} parent=1 // pred_check_branch
      %76 = sbr.rel (0) target = $region45
    $region44: #{tpu_custom_call.1} parent=1 // pred_region
      %77 = dma.done [#allocation9], 512
    $region45: #{tpu_custom_call.1} parent=1 // pred_fallthru
      _
    %v78 = vld [vmem:[#allocation3] sm:$0xff]
    %v79 = vld [vmem:[#allocation5] sm:$0xff]
    %v80 = vsub.f32 %v78, %v79
    %v81 = vand.u32 2147483647, %v80
    %v82 = vmul.f32 %v78, %v79
    %v83 = vld [vmem:[#allocation7] sm:$0xff]
    %v84 = vld [vmem:[#allocation7 + $0x8] sm:$0xff]
    %v85 = vld [vmem:[#allocation7 + $0x10] sm:$0xff]
    %v86 = vld [vmem:[#allocation7 + $0x18] sm:$0xff]
    %v87 = vld [vmem:[#allocation8] sm:$0xff]
    %v88 = vld [vmem:[#allocation8 + $0x8] sm:$0xff]
    %v89 = vld [vmem:[#allocation8 + $0x10] sm:$0xff]
    %v90 = vld [vmem:[#allocation8 + $0x18] sm:$0xff]
    %vm91 = vcmask 261120
    %v93 = vsel %vm91, %v82, 0
    %95 = vmatprep.subr.mxu0 0.0
    %96 = vmatpush1.msra.mxu0 0.0
    %97 = vmatprep.subr.mxu0 0.0
    %98 = vmatpush1.msra.mxu0 0.0
    %99 = vmatprep.subr.mxu0 0.0
    %100 = vmatpush1.msra.mxu0 0.0
    %101 = vmatprep.subr.mxu0 0.0
    %102 = vmatpush1.msra.mxu0 0.0
    %103 = vmatprep.subr.mxu0 0.0
    %104 = vmatpush1.msra.mxu0 0.0
    %105 = vmatprep.subr.mxu0 0.0
    %106 = vmatpush1.msra.mxu0 0.0
    %107 = vmatprep.subr.mxu0 0.0
    %108 = vmatpush1.msra.mxu0 0.0
    %109 = vmatprep.subr.mxu0 0.0
    %110 = vmatpush1.msra.mxu0 0.0
    %111 = vmatprep.subr.mxu0 0.0
    %112 = vmatpush1.msra.mxu0 0.0
    %113 = vmatprep.subr.mxu0 0.0
    %114 = vmatpush1.msra.mxu0 0.0
    %115 = vmatprep.subr.mxu0 0.0
    %116 = vmatpush1.msra.mxu0 0.0
    %117 = vmatprep.subr.mxu0 0.0
    %118 = vmatpush1.msra.mxu0 0.0
    %119 = vmatprep.subr.mxu0 0.0
    %120 = vmatpush1.msra.mxu0 %v90
    %121 = vmatprep.subr.mxu0 0.0
    %122 = vmatpush1.msra.mxu0 %v89
    %123 = vmatprep.subr.mxu0 0.0
    %124 = vmatpush1.msra.mxu0 %v88
    %125 = vmatprep.subr.mxu0 0.0
    %126 = vmatpush1.msra.mxu0 %v87
    %127 = vmatprep.subr.mxu0 0.0
    %128 = vmatpush2.msra.mxu0 0.0
    %129 = vmatprep.subr.mxu0 0.0
    %130 = vmatpush2.msra.mxu0 0.0
    %131 = vmatprep.subr.mxu0 0.0
    %132 = vmatpush2.msra.mxu0 0.0
    %133 = vmatprep.subr.mxu0 0.0
    %134 = vmatpush2.msra.mxu0 0.0
    %135 = vmatprep.subr.mxu0 0.0
    %136 = vmatpush2.msra.mxu0 0.0
    %137 = vmatprep.subr.mxu0 0.0
    %138 = vmatpush2.msra.mxu0 0.0
    %139 = vmatprep.subr.mxu0 0.0
    %140 = vmatpush2.msra.mxu0 0.0
    %141 = vmatprep.subr.mxu0 0.0
    %142 = vmatpush2.msra.mxu0 0.0
    %143 = vmatprep.subr.mxu0 0.0
    %144 = vmatpush2.msra.mxu0 0.0
    %145 = vmatprep.subr.mxu0 0.0
    %146 = vmatpush2.msra.mxu0 0.0
    %147 = vmatprep.subr.mxu0 0.0
    %148 = vmatpush2.msra.mxu0 0.0
    %149 = vmatprep.subr.mxu0 0.0
    %150 = vmatpush2.msra.mxu0 0.0
    %151 = vmatprep.subr.mxu0 0.0
    %152 = vmatpush2.msra.mxu0 0.0
    %153 = vmatprep.subr.mxu0 0.0
    %154 = vmatpush2.msra.mxu0 0.0
    %155 = vmatprep.subr.mxu0 0.0
    %156 = vmatpush2.msra.mxu0 0.0
    %157 = vmatprep.subr.mxu0 0.0
    %158 = vmatpush2.msra.mxu0 0.0
    %159 = vmatprep.mubr.f32.mxu0 0.0
    %160 = vmatmul.mubr.f32.gmra.mxu0 %v93
    %v161 = vpop.f32.mrf.mxu0
    %v162 = vadd.f32 0.0, %v161
    %v163 = vpop.f32.mrf.mxu0
    %164 = vdwg.mxu0
    %v166 = vsel %vm91, %v81, 0
    %168 = vmatprep.subr.mxu0 0.0
    %169 = vmatpush1.msra.mxu0 0.0
    %170 = vmatprep.subr.mxu0 0.0
    %171 = vmatpush1.msra.mxu0 0.0
    %172 = vmatprep.subr.mxu0 0.0
    %173 = vmatpush1.msra.mxu0 0.0
    %174 = vmatprep.subr.mxu0 0.0
    %175 = vmatpush1.msra.mxu0 0.0
    %176 = vmatprep.subr.mxu0 0.0
    %177 = vmatpush1.msra.mxu0 0.0
    %178 = vmatprep.subr.mxu0 0.0
    %179 = vmatpush1.msra.mxu0 0.0
    %180 = vmatprep.subr.mxu0 0.0
    %181 = vmatpush1.msra.mxu0 0.0
    %182 = vmatprep.subr.mxu0 0.0
    %183 = vmatpush1.msra.mxu0 0.0
    %184 = vmatprep.subr.mxu0 0.0
    %185 = vmatpush1.msra.mxu0 0.0
    %186 = vmatprep.subr.mxu0 0.0
    %187 = vmatpush1.msra.mxu0 0.0
    %188 = vmatprep.subr.mxu0 0.0
    %189 = vmatpush1.msra.mxu0 0.0
    %190 = vmatprep.subr.mxu0 0.0
    %191 = vmatpush1.msra.mxu0 0.0
    %192 = vmatprep.subr.mxu0 0.0
    %193 = vmatpush1.msra.mxu0 %v86
    %194 = vmatprep.subr.mxu0 0.0
    %195 = vmatpush1.msra.mxu0 %v85
    %196 = vmatprep.subr.mxu0 0.0
    %197 = vmatpush1.msra.mxu0 %v84
    %198 = vmatprep.subr.mxu0 0.0
    %199 = vmatpush1.msra.mxu0 %v83
    %200 = vmatprep.subr.mxu0 0.0
    %201 = vmatpush2.msra.mxu0 0.0
    %202 = vmatprep.subr.mxu0 0.0
    %203 = vmatpush2.msra.mxu0 0.0
    %204 = vmatprep.subr.mxu0 0.0
    %205 = vmatpush2.msra.mxu0 0.0
    %206 = vmatprep.subr.mxu0 0.0
    %207 = vmatpush2.msra.mxu0 0.0
    %208 = vmatprep.subr.mxu0 0.0
    %209 = vmatpush2.msra.mxu0 0.0
    %210 = vmatprep.subr.mxu0 0.0
    %211 = vmatpush2.msra.mxu0 0.0
    %212 = vmatprep.subr.mxu0 0.0
    %213 = vmatpush2.msra.mxu0 0.0
    %214 = vmatprep.subr.mxu0 0.0
    %215 = vmatpush2.msra.mxu0 0.0
    %216 = vmatprep.subr.mxu0 0.0
    %217 = vmatpush2.msra.mxu0 0.0
    %218 = vmatprep.subr.mxu0 0.0
    %219 = vmatpush2.msra.mxu0 0.0
    %220 = vmatprep.subr.mxu0 0.0
    %221 = vmatpush2.msra.mxu0 0.0
    %222 = vmatprep.subr.mxu0 0.0
    %223 = vmatpush2.msra.mxu0 0.0
    %224 = vmatprep.subr.mxu0 0.0
    %225 = vmatpush2.msra.mxu0 0.0
    %226 = vmatprep.subr.mxu0 0.0
    %227 = vmatpush2.msra.mxu0 0.0
    %228 = vmatprep.subr.mxu0 0.0
    %229 = vmatpush2.msra.mxu0 0.0
    %230 = vmatprep.subr.mxu0 0.0
    %231 = vmatpush2.msra.mxu0 0.0
    %232 = vmatprep.mubr.f32.mxu0 0.0
    %233 = vmatmul.mubr.f32.gmra.mxu0 %v166
    %v234 = vpop.f32.mrf.mxu0
    %v235 = vadd.f32 %v162, %v234
    %v236 = vpop.f32.mrf.mxu0
    %237 = vdwg.mxu0
    %v238 = vld [vmem:[%s4] sm:$0x1]
    %v240 = vlaneseq
    %v241 = vshrl.u32 %v240, 7
    %v242 = vsub.s32 0, %v241
    %v243 = vrot.slane %v238, %v242
    %v245 = vadd.f32 %v235, %v243
    %v246 = vxor.u32 %v245, 2147483648
    %v247 = vmul.f32 %v246, 1.442695
    %v248 = vpow.pop %v247
    %v249 = vadd.f32 %v248, 1.0
    %v250 = vrcp.pop %v249
    %v251 = vmul.f32 1.0, %v250
    %v252 = vld [vmem:[%s5] sm:$0x1]
    %v254 = vlaneseq
    %v255 = vshrl.u32 %v254, 7
    %v256 = vsub.s32 0, %v255
    %v257 = vrot.slane %v252, %v256
    %v259 = vmul.f32 %v251, %v257
    %v260 = vsel %vm91, %v259, 0.0
    %261 = vadd.xlane.f32.xlu0 %v260
    %v262 = vpop.xlane.xlu0 %261
    %s263 = sld [smem:[#allocation2]]
    %v264 = vstv %s263
    %v265 = vadd.f32 %v262, %v264
    %vm266 = vcmask 7168
    %267 = vst.msk [vmem:[%s7] sm:$0xff] %vm266, %v265
    // Predicated region
    $region46: #{tpu_custom_call.1} parent=1 // pred_check
      _
    $region47: #{tpu_custom_call.1} parent=1 // pred_check_branch
      %269 = sbr.rel (0) target = $region49
    $region48: #{tpu_custom_call.1} parent=1 // pred_region
      _
    $region49: #{tpu_custom_call.1} parent=1 // pred_fallthru
      _
    // Predicated region
    $region50: #{tpu_custom_call.1} parent=1 // pred_check
      _
    $region51: #{tpu_custom_call.1} parent=1 // pred_check_branch
      %271 = sbr.rel (0) target = $region53
    $region52: #{tpu_custom_call.1} parent=1 // pred_region
      _
    $region53: #{tpu_custom_call.1} parent=1 // pred_fallthru
      _
    %272 = vsyncpa [#allocation4], 1
    %273 = vsyncpa [#allocation6], 1
    %274 = vsyncpa [#allocation9], 1

</llo_original>
